<compile_context>
chip_gen: v5e
topology: v5e:2x2
jax: 0.10.0
libtpu: 0.0.40
codegen_flags: <defaults>
</compile_context>

<pallas_src>
import math
import functools

import jax
import jax.numpy as jnp
from jax.experimental import pallas as pl
from jax.experimental.pallas import tpu as pltpu


# ---------------------------------------------------------------------------
# Packed-weight layout (all offsets static, derived from static dims).
# ---------------------------------------------------------------------------
def _align8(n):
    return ((n + 7) // 8) * 8


def _packed_layout(state_dim, action_dim, hidden_dim, t_dim):
    t2 = 2 * t_dim
    segs = [
        ("w_t1", t_dim), ("b_t1", 1),
        ("w_m1x", action_dim), ("w_m1s", state_dim),
        ("w_t2m1", t2), ("b_m1", 1),
        ("w_m2", hidden_dim), ("b_m2", 1),
        ("w_m3", hidden_dim), ("b_m3", 1),
        ("w_f", hidden_dim), ("b_f", 1),
        ("pe_freq", 1), ("pe_phase", 1),
    ]
    layout = {}
    r = 0
    for name, rows in segs:
        layout[name] = r
        r += _align8(rows)
    width = max(t2, hidden_dim, action_dim)
    return layout, r, width


def _mish(v):
    # mish(v) = v * tanh(softplus(v)).  With w = 1 + exp(v):
    #   tanh(log(w)) = (w^2 - 1) / (w^2 + 1)
    # One EUP op (exp); rest is VPU.  Clamp at 20: exact for f32 there.
    e = jnp.exp(jnp.minimum(v, 20.0))
    n = (1.0 + e) * (1.0 + e)
    return v * ((n - 1.0) / (n + 1.0))


# ---------------------------------------------------------------------------
# Kernel: whole forward pass on one activation tile.
# ---------------------------------------------------------------------------
def mlp_kernel(time_ref, x_ref, s_ref, w_ref, out_ref,
               *, layout, a_dim, s_dim, hidden_dim, t_dim):
    f32 = jnp.float32
    H = hidden_dim
    t2 = 2 * t_dim

    def seg(name, rows, cols):
        r = layout[name]
        return w_ref[r:r + rows, :cols]

    # ---- SinusoidalPosEmb(t_dim): single transcendental pass.
    # Tables are baked into the packed buffer; cos half uses a +pi/2 phase.
    freqs = seg("pe_freq", 1, t_dim)            # (1, t_dim)
    phase = seg("pe_phase", 1, t_dim)           # (1, t_dim)
    tsin = jnp.sin(time_ref[...] * freqs + phase)          # (B, t_dim)

    # ---- time_mlp Linear(t_dim, 2*t_dim) -> Mish
    h = _mish(jnp.dot(tsin, seg("w_t1", t_dim, t2), preferred_element_type=f32)
              + seg("b_t1", 1, t2))

    # ---- cat([x, state, t_emb]) @ W_m1 with time_mlp's second Linear fused in:
    #   z = x @ W_m1x + state @ W_m1s + h @ (w_t2 @ W_m1t) + (b_m1 + b_t2 @ W_m1t)
    z = (jnp.dot(x_ref[...], seg("w_m1x", a_dim, H), preferred_element_type=f32)
         + jnp.dot(s_ref[...], seg("w_m1s", s_dim, H), preferred_element_type=f32)
         + jnp.dot(h, seg("w_t2m1", t2, H), preferred_element_type=f32)
         + seg("b_m1", 1, H))
    h = _mish(z)

    # ---- remaining mid_layer Linear+Mish blocks
    h = _mish(jnp.dot(h, seg("w_m2", H, H), preferred_element_type=f32)
              + seg("b_m2", 1, H))
    h = _mish(jnp.dot(h, seg("w_m3", H, H), preferred_element_type=f32)
              + seg("b_m3", 1, H))

    # ---- final_layer
    out_ref[...] = (jnp.dot(h, seg("w_f", H, a_dim), preferred_element_type=f32)
                    + seg("b_f", 1, a_dim)).astype(out_ref.dtype)


# ---------------------------------------------------------------------------
# Parameter construction / packing (done once, outside the forward hot path).
# ---------------------------------------------------------------------------
def xavier_normal(key, in_f, out_f):
    # matches nn.init.xavier_normal_ on a (out_f, in_f) torch weight; stored (in_f, out_f)
    std = math.sqrt(2.0 / (in_f + out_f))
    return jax.random.normal(key, (in_f, out_f), dtype=jnp.float32) * std


def make_params(key, state_dim, action_dim, hidden_dim, t_dim):
    ks = jax.random.split(key, 6)
    input_dim = state_dim + action_dim + t_dim
    return {
        "w_t1": xavier_normal(ks[0], t_dim, 2 * t_dim),
        "b_t1": jnp.zeros((1, 2 * t_dim), jnp.float32),
        "w_t2": xavier_normal(ks[1], 2 * t_dim, t_dim),
        "b_t2": jnp.zeros((1, t_dim), jnp.float32),
        "w_m1": xavier_normal(ks[2], input_dim, hidden_dim),
        "b_m1": jnp.zeros((1, hidden_dim), jnp.float32),
        "w_m2": xavier_normal(ks[3], hidden_dim, hidden_dim),
        "b_m2": jnp.zeros((1, hidden_dim), jnp.float32),
        "w_m3": xavier_normal(ks[4], hidden_dim, hidden_dim),
        "b_m3": jnp.zeros((1, hidden_dim), jnp.float32),
        "w_f": xavier_normal(ks[5], hidden_dim, action_dim),
        "b_f": jnp.zeros((1, action_dim), jnp.float32),
    }


def pack_params(params, *, state_dim, action_dim, hidden_dim, t_dim):
    """Pack all weights/biases (+ posemb tables) into one contiguous f32 buffer."""
    layout, total_rows, width = _packed_layout(state_dim, action_dim, hidden_dim, t_dim)
    t2 = 2 * t_dim
    xs = action_dim + state_dim

    w_m1 = params["w_m1"]
    w_m1t = w_m1[xs:]                                    # t_emb rows of mid_layer[0]

    # Algebraic fusion of time_mlp's 2nd Linear into mid_layer[0]'s t_emb block.
    w_t2m1 = params["w_t2"] @ w_m1t                      # (2*t_dim, H)
    b_m1p = params["b_m1"] + params["b_t2"] @ w_m1t      # (1, H)

    # Sinusoidal tables (compile/pack-time constants).
    half = t_dim // 2
    freqs_half = jnp.exp(jnp.arange(half, dtype=jnp.float32)
                         * (-math.log(10000.0) / (half - 1)))
    pe_freq = jnp.concatenate([freqs_half, freqs_half])[None, :]            # (1, t_dim)
    pe_phase = jnp.concatenate([jnp.zeros((half,), jnp.float32),
                                jnp.full((half,), math.pi / 2, jnp.float32)])[None, :]

    segs = {
        "w_t1": params["w_t1"], "b_t1": params["b_t1"],
        "w_m1x": w_m1[:action_dim], "w_m1s": w_m1[action_dim:xs],
        "w_t2m1": w_t2m1, "b_m1": b_m1p,
        "w_m2": params["w_m2"], "b_m2": params["b_m2"],
        "w_m3": params["w_m3"], "b_m3": params["b_m3"],
        "w_f": params["w_f"], "b_f": params["b_f"],
        "pe_freq": pe_freq, "pe_phase": pe_phase,
    }
    buf = jnp.zeros((total_rows, width), jnp.float32)
    for name, arr in segs.items():
        r = layout[name]
        buf = buf.at[r:r + arr.shape[0], :arr.shape[1]].set(arr.astype(jnp.float32))
    return buf


# ---------------------------------------------------------------------------
# Forward wrapper.
# ---------------------------------------------------------------------------
@functools.partial(jax.jit, static_argnames=("state_dim", "action_dim", "hidden_dim",
                                              "t_dim", "batch_block"))
def mlp_forward(packed_w, x, time, state, *, state_dim, action_dim, hidden_dim,
                t_dim, batch_block=256):
    B = x.shape[0]
    t2 = 2 * t_dim
    layout, total_rows, width = _packed_layout(state_dim, action_dim, hidden_dim, t_dim)

    kernel = functools.partial(mlp_kernel, layout=layout, a_dim=action_dim,
                               s_dim=state_dim, hidden_dim=hidden_dim, t_dim=t_dim)

    time_col = time.astype(jnp.float32).reshape(B, 1)

    flops = 2 * B * (t_dim * t2 + action_dim * hidden_dim + state_dim * hidden_dim
                     + t2 * hidden_dim + 2 * hidden_dim * hidden_dim
                     + hidden_dim * action_dim)
    transcendentals = B * (t_dim + t2 + 3 * hidden_dim)
    bytes_accessed = 4 * (B * (1 + 2 * action_dim + state_dim) + total_rows * width)
    cost = pl.CostEstimate(flops=flops, transcendentals=transcendentals,
                           bytes_accessed=bytes_accessed)

    if B <= batch_block:
        # Small batch: grid-free, everything resident in VMEM (no pipeline overhead).
        return pl.pallas_call(
            kernel,
            out_shape=jax.ShapeDtypeStruct((B, action_dim), jnp.float32),
            in_specs=[pl.BlockSpec(memory_space=pltpu.MemorySpace.VMEM)] * 4,
            out_specs=pl.BlockSpec(memory_space=pltpu.MemorySpace.VMEM),
            cost_estimate=cost,
        )(time_col, x, state, packed_w)

    # Large batch: tile the batch axis; weights stay resident (constant index_map),
    # batch axis is "parallel" so v7x can shard it across both TensorCores.
    TB = batch_block
    nb = -(-B // TB)
    Bp = nb * TB
    if Bp != B:
        pad = Bp - B
        time_col = jnp.pad(time_col, ((0, pad), (0, 0)))
        x = jnp.pad(x, ((0, pad), (0, 0)))
        state = jnp.pad(state, ((0, pad), (0, 0)))

    out = pl.pallas_call(
        kernel,
        out_shape=jax.ShapeDtypeStruct((Bp, action_dim), jnp.float32),
        grid_spec=pltpu.PrefetchScalarGridSpec(
            num_scalar_prefetch=0,
            grid=(nb,),
            in_specs=[pl.BlockSpec((TB, 1), lambda i: (i, 0)),
                      pl.BlockSpec((TB, action_dim), lambda i: (i, 0)),
                      pl.BlockSpec((TB, state_dim), lambda i: (i, 0)),
                      pl.BlockSpec((total_rows, width), lambda i: (0, 0))],
            out_specs=pl.BlockSpec((TB, action_dim), lambda i: (i, 0))),
        compiler_params=pltpu.CompilerParams(
            dimension_semantics=("parallel",),
            vmem_limit_bytes=32 << 20),
        cost_estimate=cost,
    )(time_col, x, state, packed_w)
    return out[:B]


# ---------------------------------------------------------------------------
# Plain-JAX reference of the exact module math (for the sanity check).
# ---------------------------------------------------------------------------
def sinusoidal_pos_emb(time, dim):
    half_dim = dim // 2
    emb = math.log(10000.0) / (half_dim - 1)
    freqs = jnp.exp(jnp.arange(half_dim, dtype=jnp.float32) * -emb)
    args = time[:, None].astype(jnp.float32) * freqs[None, :]
    return jnp.concatenate([jnp.sin(args), jnp.cos(args)], axis=-1)  # (B, dim)


def mlp_forward_ref(params, x, time, state, *, t_dim):
    def mish(v):
        return v * jnp.tanh(jnp.log1p(jnp.exp(v)))

    tsin = sinusoidal_pos_emb(time, t_dim)
    h = mish(tsin @ params["w_t1"] + params["b_t1"])
    t_emb = h @ params["w_t2"] + params["b_t2"]
    z = jnp.concatenate([x, state, t_emb], axis=1)
    h = mish(z @ params["w_m1"] + params["b_m1"])
    h = mish(h @ params["w_m2"] + params["b_m2"])
    h = mish(h @ params["w_m3"] + params["b_m3"])
    return h @ params["w_f"] + params["b_f"]


if __name__ == "__main__":
    state_dim, action_dim, hidden_dim, t_dim = 11, 3, 32, 16

    key = jax.random.PRNGKey(0)
    k_param, k_x, k_s, k_t = jax.random.split(key, 4)

    params = make_params(k_param, state_dim, action_dim, hidden_dim, t_dim)
    packed_w = pack_params(params, state_dim=state_dim, action_dim=action_dim,
                           hidden_dim=hidden_dim, t_dim=t_dim)

    # ---- primary check: small batch, grid-free path -------------------------
    B = 8
    x = jax.random.normal(k_x, (B, action_dim), dtype=jnp.float32)
    state = jax.random.normal(k_s, (B, state_dim), dtype=jnp.float32)
    time_in = jax.random.randint(k_t, (B,), 0, 1000).astype(jnp.float32)

    out = mlp_forward(packed_w, x, time_in, state,
                      state_dim=state_dim, action_dim=action_dim,
                      hidden_dim=hidden_dim, t_dim=t_dim)
    out = jax.block_until_ready(out)

    ref = mlp_forward_ref(params, x, time_in, state, t_dim=t_dim)
    assert out.shape == (B, action_dim)
    # sin/cos of large timestep args + the w_t2@w_m1t reassociation are both
    # f32-accurate but differ slightly from XLA's evaluation order.
    assert jnp.allclose(out, ref, atol=2e-3, rtol=2e-3), "mismatch vs JAX reference (grid-free)"

    # ---- secondary check: batch-tiled path (grid + padding), still tiny ------
    B2 = 12
    x2 = jax.random.normal(jax.random.PRNGKey(1), (B2, action_dim), dtype=jnp.float32)
    state2 = jax.random.normal(jax.random.PRNGKey(2), (B2, state_dim), dtype=jnp.float32)
    time2 = jax.random.randint(jax.random.PRNGKey(3), (B2,), 0, 1000).astype(jnp.float32)

    out2 = mlp_forward(packed_w, x2, time2, state2,
                       state_dim=state_dim, action_dim=action_dim,
                       hidden_dim=hidden_dim, t_dim=t_dim, batch_block=8)
    out2 = jax.block_until_ready(out2)
    ref2 = mlp_forward_ref(params, x2, time2, state2, t_dim=t_dim)
    assert out2.shape == (B2, action_dim)
    assert jnp.allclose(out2, ref2, atol=2e-3, rtol=2e-3), "mismatch vs JAX reference (tiled)"

    print("KERNEL_OK")
</pallas_src>

<mosaic_0001>
module attributes {stable_mosaic.version = 11 : i64} {
  func.func @mlp_kernel(%arg0: memref<8x1xf32, #tpu.memory_space<vmem>>, %arg1: memref<8x3xf32, #tpu.memory_space<vmem>>, %arg2: memref<8x11xf32, #tpu.memory_space<vmem>>, %arg3: memref<224x32xf32, #tpu.memory_space<vmem>>, %arg4: memref<8x3xf32, #tpu.memory_space<vmem>>) attributes {dimension_semantics = [], scalar_prefetch = 0 : i64, scratch_operands = 0 : i64, tpu.core_type = #tpu.core_type<tc>} {
    %c208 = arith.constant 208 : index
    %c0 = arith.constant 0 : index
    %0 = vector.load %arg3[%c208, %c0] : memref<224x32xf32, #tpu.memory_space<vmem>>, vector<1x16xf32>
    %c216 = arith.constant 216 : index
    %c0_0 = arith.constant 0 : index
    %1 = vector.load %arg3[%c216, %c0_0] : memref<224x32xf32, #tpu.memory_space<vmem>>, vector<1x16xf32>
    %c0_1 = arith.constant 0 : index
    %c0_2 = arith.constant 0 : index
    %2 = vector.load %arg0[%c0_1, %c0_2] : memref<8x1xf32, #tpu.memory_space<vmem>>, vector<8x1xf32>
    %3 = vector.broadcast %2 : vector<8x1xf32> to vector<8x16xf32>
    %4 = vector.broadcast %0 : vector<1x16xf32> to vector<8x16xf32>
    %5 = arith.mulf %3, %4 : vector<8x16xf32>
    %6 = vector.broadcast %1 : vector<1x16xf32> to vector<8x16xf32>
    %7 = arith.addf %5, %6 : vector<8x16xf32>
    %8 = math.sin %7 : vector<8x16xf32>
    %c0_3 = arith.constant 0 : index
    %c0_4 = arith.constant 0 : index
    %9 = vector.load %arg3[%c0_3, %c0_4] : memref<224x32xf32, #tpu.memory_space<vmem>>, vector<16x32xf32>
    %cst = arith.constant dense<0.000000e+00> : vector<8x32xf32>
    %10 = tpu.matmul %8, %9, %cst {dimension_numbers = #tpu.dot_dimension_numbers<[1], [0], [0], [1], [0, 0, 1, 1], [], []>} : vector<8x16xf32>, vector<16x32xf32>, vector<8x32xf32> -> vector<8x32xf32>
    %c16 = arith.constant 16 : index
    %c0_5 = arith.constant 0 : index
    %11 = vector.load %arg3[%c16, %c0_5] : memref<224x32xf32, #tpu.memory_space<vmem>>, vector<1x32xf32>
    %12 = vector.broadcast %11 : vector<1x32xf32> to vector<8x32xf32>
    %13 = arith.addf %10, %12 : vector<8x32xf32>
    %cst_6 = arith.constant 2.000000e+01 : f32
    %14 = vector.broadcast %cst_6 : f32 to vector<8x32xf32>
    %15 = arith.minimumf %13, %14 : vector<8x32xf32>
    %16 = math.exp %15 : vector<8x32xf32>
    %cst_7 = arith.constant 1.000000e+00 : f32
    %17 = vector.broadcast %cst_7 : f32 to vector<8x32xf32>
    %18 = arith.addf %17, %16 : vector<8x32xf32>
    %cst_8 = arith.constant 1.000000e+00 : f32
    %19 = vector.broadcast %cst_8 : f32 to vector<8x32xf32>
    %20 = arith.addf %19, %16 : vector<8x32xf32>
    %21 = arith.mulf %18, %20 : vector<8x32xf32>
    %cst_9 = arith.constant 1.000000e+00 : f32
    %22 = vector.broadcast %cst_9 : f32 to vector<8x32xf32>
    %23 = arith.subf %21, %22 : vector<8x32xf32>
    %cst_10 = arith.constant 1.000000e+00 : f32
    %24 = vector.broadcast %cst_10 : f32 to vector<8x32xf32>
    %25 = arith.addf %21, %24 : vector<8x32xf32>
    %26 = arith.divf %23, %25 : vector<8x32xf32>
    %27 = arith.mulf %13, %26 : vector<8x32xf32>
    %c0_11 = arith.constant 0 : index
    %c0_12 = arith.constant 0 : index
    %28 = vector.load %arg1[%c0_11, %c0_12] : memref<8x3xf32, #tpu.memory_space<vmem>>, vector<8x3xf32>
    %c24 = arith.constant 24 : index
    %c0_13 = arith.constant 0 : index
    %29 = vector.load %arg3[%c24, %c0_13] : memref<224x32xf32, #tpu.memory_space<vmem>>, vector<3x32xf32>
    %cst_14 = arith.constant dense<0.000000e+00> : vector<8x32xf32>
    %30 = tpu.matmul %28, %29, %cst_14 {dimension_numbers = #tpu.dot_dimension_numbers<[1], [0], [0], [1], [0, 0, 1, 1], [], []>} : vector<8x3xf32>, vector<3x32xf32>, vector<8x32xf32> -> vector<8x32xf32>
    %c0_15 = arith.constant 0 : index
    %c0_16 = arith.constant 0 : index
    %31 = vector.load %arg2[%c0_15, %c0_16] : memref<8x11xf32, #tpu.memory_space<vmem>>, vector<8x11xf32>
    %c32 = arith.constant 32 : index
    %c0_17 = arith.constant 0 : index
    %32 = vector.load %arg3[%c32, %c0_17] : memref<224x32xf32, #tpu.memory_space<vmem>>, vector<11x32xf32>
    %cst_18 = arith.constant dense<0.000000e+00> : vector<8x32xf32>
    %33 = tpu.matmul %31, %32, %cst_18 {dimension_numbers = #tpu.dot_dimension_numbers<[1], [0], [0], [1], [0, 0, 1, 1], [], []>} : vector<8x11xf32>, vector<11x32xf32>, vector<8x32xf32> -> vector<8x32xf32>
    %34 = arith.addf %30, %33 : vector<8x32xf32>
    %c48 = arith.constant 48 : index
    %c0_19 = arith.constant 0 : index
    %35 = vector.load %arg3[%c48, %c0_19] : memref<224x32xf32, #tpu.memory_space<vmem>>, vector<32x32xf32>
    %cst_20 = arith.constant dense<0.000000e+00> : vector<8x32xf32>
    %36 = tpu.matmul %27, %35, %cst_20 {dimension_numbers = #tpu.dot_dimension_numbers<[1], [0], [0], [1], [0, 0, 1, 1], [], []>} : vector<8x32xf32>, vector<32x32xf32>, vector<8x32xf32> -> vector<8x32xf32>
    %37 = arith.addf %34, %36 : vector<8x32xf32>
    %c80 = arith.constant 80 : index
    %c0_21 = arith.constant 0 : index
    %38 = vector.load %arg3[%c80, %c0_21] : memref<224x32xf32, #tpu.memory_space<vmem>>, vector<1x32xf32>
    %39 = vector.broadcast %38 : vector<1x32xf32> to vector<8x32xf32>
    %40 = arith.addf %37, %39 : vector<8x32xf32>
    %cst_22 = arith.constant 2.000000e+01 : f32
    %41 = vector.broadcast %cst_22 : f32 to vector<8x32xf32>
    %42 = arith.minimumf %40, %41 : vector<8x32xf32>
    %43 = math.exp %42 : vector<8x32xf32>
    %cst_23 = arith.constant 1.000000e+00 : f32
    %44 = vector.broadcast %cst_23 : f32 to vector<8x32xf32>
    %45 = arith.addf %44, %43 : vector<8x32xf32>
    %cst_24 = arith.constant 1.000000e+00 : f32
    %46 = vector.broadcast %cst_24 : f32 to vector<8x32xf32>
    %47 = arith.addf %46, %43 : vector<8x32xf32>
    %48 = arith.mulf %45, %47 : vector<8x32xf32>
    %cst_25 = arith.constant 1.000000e+00 : f32
    %49 = vector.broadcast %cst_25 : f32 to vector<8x32xf32>
    %50 = arith.subf %48, %49 : vector<8x32xf32>
    %cst_26 = arith.constant 1.000000e+00 : f32
    %51 = vector.broadcast %cst_26 : f32 to vector<8x32xf32>
    %52 = arith.addf %48, %51 : vector<8x32xf32>
    %53 = arith.divf %50, %52 : vector<8x32xf32>
    %54 = arith.mulf %40, %53 : vector<8x32xf32>
    %c88 = arith.constant 88 : index
    %c0_27 = arith.constant 0 : index
    %55 = vector.load %arg3[%c88, %c0_27] : memref<224x32xf32, #tpu.memory_space<vmem>>, vector<32x32xf32>
    %cst_28 = arith.constant dense<0.000000e+00> : vector<8x32xf32>
    %56 = tpu.matmul %54, %55, %cst_28 {dimension_numbers = #tpu.dot_dimension_numbers<[1], [0], [0], [1], [0, 0, 1, 1], [], []>} : vector<8x32xf32>, vector<32x32xf32>, vector<8x32xf32> -> vector<8x32xf32>
    %c120 = arith.constant 120 : index
    %c0_29 = arith.constant 0 : index
    %57 = vector.load %arg3[%c120, %c0_29] : memref<224x32xf32, #tpu.memory_space<vmem>>, vector<1x32xf32>
    %58 = vector.broadcast %57 : vector<1x32xf32> to vector<8x32xf32>
    %59 = arith.addf %56, %58 : vector<8x32xf32>
    %cst_30 = arith.constant 2.000000e+01 : f32
    %60 = vector.broadcast %cst_30 : f32 to vector<8x32xf32>
    %61 = arith.minimumf %59, %60 : vector<8x32xf32>
    %62 = math.exp %61 : vector<8x32xf32>
    %cst_31 = arith.constant 1.000000e+00 : f32
    %63 = vector.broadcast %cst_31 : f32 to vector<8x32xf32>
    %64 = arith.addf %63, %62 : vector<8x32xf32>
    %cst_32 = arith.constant 1.000000e+00 : f32
    %65 = vector.broadcast %cst_32 : f32 to vector<8x32xf32>
    %66 = arith.addf %65, %62 : vector<8x32xf32>
    %67 = arith.mulf %64, %66 : vector<8x32xf32>
    %cst_33 = arith.constant 1.000000e+00 : f32
    %68 = vector.broadcast %cst_33 : f32 to vector<8x32xf32>
    %69 = arith.subf %67, %68 : vector<8x32xf32>
    %cst_34 = arith.constant 1.000000e+00 : f32
    %70 = vector.broadcast %cst_34 : f32 to vector<8x32xf32>
    %71 = arith.addf %67, %70 : vector<8x32xf32>
    %72 = arith.divf %69, %71 : vector<8x32xf32>
    %73 = arith.mulf %59, %72 : vector<8x32xf32>
    %c128 = arith.constant 128 : index
    %c0_35 = arith.constant 0 : index
    %74 = vector.load %arg3[%c128, %c0_35] : memref<224x32xf32, #tpu.memory_space<vmem>>, vector<32x32xf32>
    %cst_36 = arith.constant dense<0.000000e+00> : vector<8x32xf32>
    %75 = tpu.matmul %73, %74, %cst_36 {dimension_numbers = #tpu.dot_dimension_numbers<[1], [0], [0], [1], [0, 0, 1, 1], [], []>} : vector<8x32xf32>, vector<32x32xf32>, vector<8x32xf32> -> vector<8x32xf32>
    %c160 = arith.constant 160 : index
    %c0_37 = arith.constant 0 : index
    %76 = vector.load %arg3[%c160, %c0_37] : memref<224x32xf32, #tpu.memory_space<vmem>>, vector<1x32xf32>
    %77 = vector.broadcast %76 : vector<1x32xf32> to vector<8x32xf32>
    %78 = arith.addf %75, %77 : vector<8x32xf32>
    %cst_38 = arith.constant 2.000000e+01 : f32
    %79 = vector.broadcast %cst_38 : f32 to vector<8x32xf32>
    %80 = arith.minimumf %78, %79 : vector<8x32xf32>
    %81 = math.exp %80 : vector<8x32xf32>
    %cst_39 = arith.constant 1.000000e+00 : f32
    %82 = vector.broadcast %cst_39 : f32 to vector<8x32xf32>
    %83 = arith.addf %82, %81 : vector<8x32xf32>
    %cst_40 = arith.constant 1.000000e+00 : f32
    %84 = vector.broadcast %cst_40 : f32 to vector<8x32xf32>
    %85 = arith.addf %84, %81 : vector<8x32xf32>
    %86 = arith.mulf %83, %85 : vector<8x32xf32>
    %cst_41 = arith.constant 1.000000e+00 : f32
    %87 = vector.broadcast %cst_41 : f32 to vector<8x32xf32>
    %88 = arith.subf %86, %87 : vector<8x32xf32>
    %cst_42 = arith.constant 1.000000e+00 : f32
    %89 = vector.broadcast %cst_42 : f32 to vector<8x32xf32>
    %90 = arith.addf %86, %89 : vector<8x32xf32>
    %91 = arith.divf %88, %90 : vector<8x32xf32>
    %92 = arith.mulf %78, %91 : vector<8x32xf32>
    %c168 = arith.constant 168 : index
    %c0_43 = arith.constant 0 : index
    %93 = vector.load %arg3[%c168, %c0_43] : memref<224x32xf32, #tpu.memory_space<vmem>>, vector<32x3xf32>
    %cst_44 = arith.constant dense<0.000000e+00> : vector<8x3xf32>
    %94 = tpu.matmul %92, %93, %cst_44 {dimension_numbers = #tpu.dot_dimension_numbers<[1], [0], [0], [1], [0, 0, 1, 1], [], []>} : vector<8x32xf32>, vector<32x3xf32>, vector<8x3xf32> -> vector<8x3xf32>
    %c200 = arith.constant 200 : index
    %c0_45 = arith.constant 0 : index
    %95 = vector.load %arg3[%c200, %c0_45] : memref<224x32xf32, #tpu.memory_space<vmem>>, vector<1x3xf32>
    %96 = vector.broadcast %95 : vector<1x3xf32> to vector<8x3xf32>
    %97 = arith.addf %94, %96 : vector<8x3xf32>
    %c0_46 = arith.constant 0 : index
    %c0_47 = arith.constant 0 : index
    %98 = vector.load %arg4[%c0_46, %c0_47] : memref<8x3xf32, #tpu.memory_space<vmem>>, vector<8x3xf32>
    tpu.vector_store %arg4[%c0_46, %c0_47], %97 {strides = array<i32>} : memref<8x3xf32, #tpu.memory_space<vmem>>, vector<8x3xf32>,
    return
  }
}

</mosaic_0001>

<llo_original>
// kernel: mlp_forward.1
$region0: #{mlp_forward.1}
  #allocation0 [shape = 'u32[]', space=smem, size = 0x4, offset = 0x4, fixed_abs, tag = 'smem constant byte address 0x4 - core index']
  #allocation1 [shape = 'u32[72,128]{1,0:T(1,128)}', space=vmem, size = 0x9000, scoped, tag = 'internal scratch']
  %s0 = inlined_call_operand.vmem [shape: f32[8,1], index: 0, kind: input, shape index: {}]
  %s1 = inlined_call_operand.vmem [shape: f32[8,3], index: 1, kind: input, shape index: {}]
  %s2 = inlined_call_operand.vmem [shape: f32[8,11], index: 2, kind: input, shape index: {}]
  %s3 = inlined_call_operand.vmem [shape: f32[224,32], index: 3, kind: input, shape index: {}]
  %s4 = inlined_call_operand.vmem [shape: f32[8,3], index: 4, kind: output, shape index: {}]
  %s5 = sld [smem:[#allocation0]]
  $region26: #{mlp_forward.1} parent=0
    _
  %s7 = ssub.s32 1, %s5
  %s8 = scalar_select 0, %s7, %s5
  // Predicated region
  $region2: #{mlp_forward.1} parent=0 // pred_check
    _
  $region3: #{mlp_forward.1} parent=0 // pred_check_branch
    %10 = sbr.rel (0) target = $region5
  $region4: #{mlp_forward.1} parent=0 // pred_region
    _
  $region5: #{mlp_forward.1} parent=0 // pred_fallthru
    _
  // Predicated region
  $region6: #{mlp_forward.1} parent=0 // pred_check
    _
  $region7: #{mlp_forward.1} parent=0 // pred_check_branch
    %12 = sbr.rel (0) target = $region9
  $region8: #{mlp_forward.1} parent=0 // pred_region
    _
  $region9: #{mlp_forward.1} parent=0 // pred_fallthru
    _
  // Predicated region
  $region10: #{mlp_forward.1} parent=0 // pred_check
    _
  $region11: #{mlp_forward.1} parent=0 // pred_check_branch
    %14 = sbr.rel (0) target = $region13
  $region12: #{mlp_forward.1} parent=0 // pred_region
    _
  $region13: #{mlp_forward.1} parent=0 // pred_fallthru
    _
  // Predicated region
  $region14: #{mlp_forward.1} parent=0 // pred_check
    _
  $region15: #{mlp_forward.1} parent=0 // pred_check_branch
    %16 = sbr.rel (0) target = $region17
  $region16: #{mlp_forward.1} parent=0 // pred_region
    _
  $region17: #{mlp_forward.1} parent=0 // pred_fallthru
    _
  %v17 = vld [vmem:[%s3 + $0xd0] sm:$0x1]
  %v18 = vld [vmem:[%s3 + $0xd8] sm:$0x1]
  %v19 = vld [vmem:[%s0] sm:$0xff]
  %21 = vset.pattern.permute.xlu0 0
  %22 = vperm.xlu0 %21, %v19
  %v23 = vpop.permute.xlu0 %22
  %v25 = vperm.slane %v17, 0
  %v26 = vmul.f32 %v23, %v25
  %v27 = vperm.slane %v18, 0
  %v28 = vadd.f32 %v26, %v27
  %v29 = vand.u32 2147483647, %v28
  %vm30 = vcmp.le.f32.partialorder %v29, 0.7853982
  %vm31 = vcmp.lt.s32.totalorder %v28, 0
  %v32 = vand.u32 %v28, 2139095040
  %v33 = vshrl.u32 %v32, 23
  %v34 = vsub.s32 %v33, 127
  %v35 = vand.u32 2147483647, %v28
  %v36 = vand.u32 %v35, 8388607
  %v37 = vor.u32 %v36, 8388608
  %v38 = vsub.s32 0, %v37
  %v39 = vadd.s32 %v34, 1
  %vm40 = vcmp.gt.s32.totalorder %v39, 0
  %v41 = vsel %vm40, %v39, 0
  %v42 = vshrl.u32 %v41, 5
  %v43 = vand.u32 %v41, 31
  %v44 = vsub.s32 32, %v43
  %v45 = vshrl.u32 683565275, %v44
  %v46 = vshll.u32 683565275, %v43
  %v47 = vshrl.u32 2475754826, %v44
  %v48 = vor.u32 %v46, %v47
  %v49 = vshll.u32 2475754826, %v43
  %v50 = vshrl.u32 2131351028, %v44
  %v51 = vor.u32 %v49, %v50
  %v52 = vshll.u32 2131351028, %v43
  %v53 = vshrl.u32 2102212464, %v44
  %v54 = vor.u32 %v52, %v53
  %v55 = vshll.u32 2102212464, %v43
  %v56 = vshrl.u32 920167782, %v44
  %v57 = vor.u32 %v55, %v56
  %v58 = vshll.u32 920167782, %v43
  %v59 = vshrl.u32 1326507024, %v44
  %v60 = vor.u32 %v58, %v59
  %vm61 = vcmp.lt.s32.totalorder %v42, 1
  %vm62 = vcmp.lt.s32.totalorder %v42, 2
  %vm63 = vcmp.lt.s32.totalorder %v42, 3
  %vm64 = vcmp.lt.s32.totalorder %v42, 4
  %v65 = vsel %vm61, %v45, %v48
  %v66 = vsel %vm64, %v54, 2102212464
  %v67 = vsel %vm63, %v51, %v66
  %v68 = vsel %vm62, %v65, %v67
  %v69 = vsel %vm61, %v48, %v51
  %v70 = vsel %vm64, %v57, 920167782
  %v71 = vsel %vm63, %v54, %v70
  %v72 = vsel %vm62, %v69, %v71
  %v73 = vsel %vm61, %v51, %v54
  %v74 = vsel %vm64, %v60, 1326507024
  %v75 = vsel %vm63, %v57, %v74
  %v76 = vsel %vm62, %v73, %v75
  %v77 = vshll.u32 %v37, 8
  %v78 = vand.u32 %v77, 65535
  %v79 = vshrl.u32 %v77, 16
  %v80 = vand.u32 %v76, 65535
  %v81 = vshrl.u32 %v76, 16
  %v82 = vmul.u32 %v78, %v80
  %v83 = vmul.u32 %v78, %v81
  %v84 = vmul.u32 %v79, %v80
  %v85 = vmul.u32 %v79, %v81
  %v86 = vshll.u32 %v83, 16
  %v87 = vshrl.u32 %v83, 16
  %v88 = vshll.u32 %v84, 16
  %v89 = vshrl.u32 %v84, 16
  %vm90 = vc.u32 %v82, %v86
  %v91 = vsel %vm90, 1, 0
  %v92 = vadd.s32 %v82, %v86
  %v93 = vadd.s32 %v85, %v91
  %vm94 = vc.u32 %v92, %v88
  %v95 = vsel %vm94, 1, 0
  %v96 = vadd.s32 %v92, %v88
  %v97 = vadd.s32 %v93, %v95
  %v98 = vadd.s32 %v97, %v87
  %v99 = vadd.s32 %v98, %v89
  %v100 = vand.u32 %v77, 65535
  %v101 = vshrl.u32 %v77, 16
  %v102 = vand.u32 %v72, 65535
  %v103 = vshrl.u32 %v72, 16
  %v104 = vmul.u32 %v100, %v102
  %v105 = vmul.u32 %v100, %v103
  %v106 = vmul.u32 %v101, %v102
  %v107 = vmul.u32 %v101, %v103
  %v108 = vshll.u32 %v105, 16
  %v109 = vshrl.u32 %v105, 16
  %v110 = vshll.u32 %v106, 16
  %v111 = vshrl.u32 %v106, 16
  %vm112 = vc.u32 %v104, %v108
  %v113 = vsel %vm112, 1, 0
  %v114 = vadd.s32 %v104, %v108
  %v115 = vadd.s32 %v107, %v113
  %vm116 = vc.u32 %v114, %v110
  %v117 = vsel %vm116, 1, 0
  %v118 = vadd.s32 %v114, %v110
  %v119 = vadd.s32 %v115, %v117
  %v120 = vadd.s32 %v119, %v109
  %v121 = vadd.s32 %v120, %v111
  %v122 = vmul.u32 %v77, %v68
  %v123 = vadd.s32 %v99, %v118
  %vm124 = vc.u32 %v99, %v118
  %v125 = vadd.s32 %v121, 1
  %v126 = vsel %vm124, %v125, %v121
  %v127 = vadd.s32 %v122, %v126
  %v128 = vadd.s32 %v127, 536870912
  %v129 = vshrl.u32 %v128, 30
  %v130 = vshll.u32 %v129, 30
  %v131 = vsub.s32 %v127, %v130
  %vm132 = vcmp.lt.s32.totalorder %v131, 0
  %v133 = vsub.s32 0, %v131
  %v134 = vsel %vm132, %v133, %v131
  %v135 = vclz %v134
  %v136 = vsub.s32 %v135, 2
  %vm137 = vcmp.gt.s32.totalorder 0, %v136
  %v138 = vsel %vm137, 0, %v136
  %v139 = vsub.s32 32, %v138
  %v140 = vshll.u32 %v131, %v138
  %v141 = vshrl.u32 %v123, %v139
  %v142 = vor.u32 %v140, %v141
  %v143 = vsub.s32 4294967266, %v138
  %v144 = vadd.s32 %v143, 127
  %v145 = vshll.u32 %v144, 23
  %v146 = vor.u32 4788187, %v145
  %v147 = vand.u32 2147483647, %v146
  %v149 = vcvt.s32.f32 %v142
  %v150 = vmul.f32 %v149, %v147
  %v151 = vxor.u32 %v150, 2147483648
  %v152 = vsel %vm31, %v151, %v150
  %v153 = vsub.s32 4, %v129
  %v154 = vsel %vm31, %v153, %v129
  %v155 = vsel %vm30, %v28, %v152
  %v156 = vsel %vm30, 0, %v154
  %v157 = vmul.f32 %v155, %v155
  %v158 = vmul.f32 %v157, -0.001358992
  %v159 = vadd.f32 %v158, 0.041655596
  %v160 = vmul.f32 %v157, %v159
  %v161 = vadd.f32 %v160, -0.4999988
  %v162 = vmul.f32 %v157, %v161
  %v163 = vadd.f32 1.0, %v162
  %v164 = vmul.f32 %v155, %v155
  %v165 = vmul.f32 %v164, -0.00019511016
  %v166 = vadd.f32 %v165, 0.008332121
  %v167 = vmul.f32 %v164, %v166
  %v168 = vadd.f32 %v167, -0.16666654
  %v169 = vmul.f32 %v164, %v168
  %v170 = vadd.f32 %v169, 1.0
  %v171 = vmul.f32 %v170, %v155
  %vm172 = vweird.f32 %v28
  %v173 = vadd.s32 %v156, 3
  %v174 = vand.u32 %v173, 3
  %vm175 = vcmp.lt.s32.totalorder %v174, 2
  %vm176 = vcmp.eq.s32.totalorder %v174, 0
  %v177 = vxor.u32 %v171, 2147483648
  %v178 = vsel %vm176, %v163, %v177
  %vm179 = vcmp.eq.s32.totalorder %v174, 2
  %v180 = vxor.u32 %v163, 2147483648
  %v181 = vsel %vm179, %v180, %v171
  %v182 = vsel %vm175, %v178, %v181
  %v183 = vsel %vm172, nan, %v182
  %v184 = vld [vmem:[%s3] sm:$0xff]
  %v185 = vld [vmem:[%s3 + $0x8] sm:$0xff]
  %v186 = vld [vmem:[%s3 + $0x10] sm:$0x1]
  %v187 = vperm.slane %v186, 0
  %vm188 = vcmask 130048
  %v190 = vsel %vm188, %v183, 0
  %192 = vmatpush.msra.mxu0 0.0
  %193 = vmatpush.msra.mxu0 0.0
  %194 = vmatpush.msra.mxu0 0.0
  %195 = vmatpush.msra.mxu0 0.0
  %196 = vmatpush.msra.mxu0 0.0
  %197 = vmatpush.msra.mxu0 0.0
  %198 = vmatpush.msra.mxu0 0.0
  %199 = vmatpush.msra.mxu0 0.0
  %200 = vmatpush.msra.mxu0 0.0
  %201 = vmatpush.msra.mxu0 0.0
  %202 = vmatpush.msra.mxu0 0.0
  %203 = vmatpush.msra.mxu0 0.0
  %204 = vmatpush.msra.mxu0 0.0
  %205 = vmatpush.msra.mxu0 0.0
  %206 = vmatpush.msra.mxu0 %v185
  %207 = vmatpush.msra.mxu0 %v184
  %208 = vmatmul.f32.gmra.mxu0 %v190
  %v209 = vpop.f32.mrf.mxu0
  %v210 = vadd.f32 %v187, %v209
  %211 = vdwg.mxu0
  %v212 = vmin.f32 %v210, 20.0
  %v213 = vmul.f32 %v212, 1.442695
  %v214 = vpow.pop %v213
  %v215 = vadd.f32 %v214, 1.0
  %v216 = vmul.f32 %v215, %v215
  %v217 = vsub.f32 %v216, 1.0
  %v218 = vadd.f32 %v216, 1.0
  %v219 = vrcp.pop %v218
  %v220 = vmul.f32 %v218, %v219
  %v221 = vsub.f32 1.0, %v220
  %v222 = vmul.f32 %v219, %v221
  %v223 = vadd.f32 %v219, %v222
  %vm224 = vweird.f32 %v218
  %vm225 = vweird.f32 %v219
  %vm226 = vmor %vm224, %vm225
  %v227 = vsel %vm226, %v219, %v223
  %v228 = vand.u32 2147483647, %v218
  %vm229 = vcmp.eq.f32.partialorder %v228, 8.507059e+37
  %v230 = vand.u32 %v218, 2147483648
  %v231 = vor.u32 1.1754944e-38, %v230
  %v232 = vsel %vm229, %v231, %v227
  %v233 = vmul.f32 %v217, %v232
  %v234 = vmul.f32 %v210, %v233
  %v235 = vld [vmem:[%s1] sm:$0xff]
  %v236 = vld [vmem:[%s3 + $0x18] sm:$0x7]
  %v237 = vld [vmem:[%s2] sm:$0xff]
  %v238 = vld [vmem:[%s3 + $0x20] sm:$0xff]
  %v239 = vld [vmem:[%s3 + $0x28] sm:$0x7]
  %vm240 = vcmask 89088
  %v242 = vsel %vm240, %v237, 0
  %vm244 = vcmask 1042432
  %v246 = vsel %vm244, %v239, 0
  %248 = vmatpush.msra.mxu0 0.0
  %249 = vmatpush.msra.mxu0 0.0
  %250 = vmatpush.msra.mxu0 0.0
  %251 = vmatpush.msra.mxu0 0.0
  %252 = vmatpush.msra.mxu0 0.0
  %253 = vmatpush.msra.mxu0 0.0
  %254 = vmatpush.msra.mxu0 0.0
  %255 = vmatpush.msra.mxu0 0.0
  %256 = vmatpush.msra.mxu0 0.0
  %257 = vmatpush.msra.mxu0 0.0
  %258 = vmatpush.msra.mxu0 0.0
  %259 = vmatpush.msra.mxu0 0.0
  %260 = vmatpush.msra.mxu0 0.0
  %261 = vmatpush.msra.mxu0 0.0
  %262 = vmatpush.msra.mxu0 %v246
  %263 = vmatpush.msra.mxu0 %v238
  %264 = vmatmul.f32.gmra.mxu0 %v242
  %v265 = vpop.f32.mrf.mxu0
  %v266 = vadd.f32 0.0, %v265
  %267 = vdwg.mxu0
  %vm268 = vcmask 23552
  %v270 = vsel %vm268, %v235, 0
  %v273 = vsel %vm244, %v236, 0
  %275 = vmatpush.msra.mxu0 0.0
  %276 = vmatpush.msra.mxu0 0.0
  %277 = vmatpush.msra.mxu0 0.0
  %278 = vmatpush.msra.mxu0 0.0
  %279 = vmatpush.msra.mxu0 0.0
  %280 = vmatpush.msra.mxu0 0.0
  %281 = vmatpush.msra.mxu0 0.0
  %282 = vmatpush.msra.mxu0 0.0
  %283 = vmatpush.msra.mxu0 0.0
  %284 = vmatpush.msra.mxu0 0.0
  %285 = vmatpush.msra.mxu0 0.0
  %286 = vmatpush.msra.mxu0 0.0
  %287 = vmatpush.msra.mxu0 0.0
  %288 = vmatpush.msra.mxu0 0.0
  %289 = vmatpush.msra.mxu0 0.0
  %290 = vmatpush.msra.mxu0 %v273
  %291 = vmatmul.f32.gmra.mxu0 %v270
  %v292 = vpop.f32.mrf.mxu0
  %v293 = vadd.f32 %v266, %v292
  %294 = vdwg.mxu0
  %v295 = vld [vmem:[%s3 + $0x30] sm:$0xff]
  %v296 = vld [vmem:[%s3 + $0x38] sm:$0xff]
  %v297 = vld [vmem:[%s3 + $0x40] sm:$0xff]
  %v298 = vld [vmem:[%s3 + $0x48] sm:$0xff]
  %vm299 = vcmask 261120
  %v301 = vsel %vm299, %v234, 0
  %303 = vmatpush.msra.mxu0 0.0
  %304 = vmatpush.msra.mxu0 0.0
  %305 = vmatpush.msra.mxu0 0.0
  %306 = vmatpush.msra.mxu0 0.0
  %307 = vmatpush.msra.mxu0 0.0
  %308 = vmatpush.msra.mxu0 0.0
  %309 = vmatpush.msra.mxu0 0.0
  %310 = vmatpush.msra.mxu0 0.0
  %311 = vmatpush.msra.mxu0 0.0
  %312 = vmatpush.msra.mxu0 0.0
  %313 = vmatpush.msra.mxu0 0.0
  %314 = vmatpush.msra.mxu0 0.0
  %315 = vmatpush.msra.mxu0 %v298
  %316 = vmatpush.msra.mxu0 %v297
  %317 = vmatpush.msra.mxu0 %v296
  %318 = vmatpush.msra.mxu0 %v295
  %319 = vmatmul.f32.gmra.mxu0 %v301
  %v320 = vpop.f32.mrf.mxu0
  %v321 = vadd.f32 0.0, %v320
  %322 = vdwg.mxu0
  %v323 = vadd.f32 %v293, %v321
  %v324 = vld [vmem:[%s3 + $0x50] sm:$0x1]
  %v325 = vperm.slane %v324, 0
  %v326 = vadd.f32 %v323, %v325
  %v327 = vmin.f32 %v326, 20.0
  %v328 = vmul.f32 %v327, 1.442695
  %v329 = vpow.pop %v328
  %v330 = vadd.f32 %v329, 1.0
  %v331 = vmul.f32 %v330, %v330
  %v332 = vsub.f32 %v331, 1.0
  %v333 = vadd.f32 %v331, 1.0
  %v334 = vrcp.pop %v333
  %v335 = vmul.f32 %v333, %v334
  %v336 = vsub.f32 1.0, %v335
  %v337 = vmul.f32 %v334, %v336
  %v338 = vadd.f32 %v334, %v337
  %vm339 = vweird.f32 %v333
  %vm340 = vweird.f32 %v334
  %vm341 = vmor %vm339, %vm340
  %v342 = vsel %vm341, %v334, %v338
  %v343 = vand.u32 2147483647, %v333
  %vm344 = vcmp.eq.f32.partialorder %v343, 8.507059e+37
  %v345 = vand.u32 %v333, 2147483648
  %v346 = vor.u32 1.1754944e-38, %v345
  %v347 = vsel %vm344, %v346, %v342
  %v348 = vmul.f32 %v332, %v347
  %v349 = vmul.f32 %v326, %v348
  %v350 = vld [vmem:[%s3 + $0x58] sm:$0xff]
  %v351 = vld [vmem:[%s3 + $0x60] sm:$0xff]
  %v352 = vld [vmem:[%s3 + $0x68] sm:$0xff]
  %v353 = vld [vmem:[%s3 + $0x70] sm:$0xff]
  %v354 = vld [vmem:[%s3 + $0x78] sm:$0x1]
  %v355 = vperm.slane %v354, 0
  %v357 = vsel %vm299, %v349, 0
  %359 = vmatpush.msra.mxu0 0.0
  %360 = vmatpush.msra.mxu0 0.0
  %361 = vmatpush.msra.mxu0 0.0
  %362 = vmatpush.msra.mxu0 0.0
  %363 = vmatpush.msra.mxu0 0.0
  %364 = vmatpush.msra.mxu0 0.0
  %365 = vmatpush.msra.mxu0 0.0
  %366 = vmatpush.msra.mxu0 0.0
  %367 = vmatpush.msra.mxu0 0.0
  %368 = vmatpush.msra.mxu0 0.0
  %369 = vmatpush.msra.mxu0 0.0
  %370 = vmatpush.msra.mxu0 0.0
  %371 = vmatpush.msra.mxu0 %v353
  %372 = vmatpush.msra.mxu0 %v352
  %373 = vmatpush.msra.mxu0 %v351
  %374 = vmatpush.msra.mxu0 %v350
  %375 = vmatmul.f32.gmra.mxu0 %v357
  %v376 = vpop.f32.mrf.mxu0
  %v377 = vadd.f32 %v355, %v376
  %378 = vdwg.mxu0
  %v379 = vmin.f32 %v377, 20.0
  %v380 = vmul.f32 %v379, 1.442695
  %v381 = vpow.pop %v380
  %v382 = vadd.f32 %v381, 1.0
  %v383 = vmul.f32 %v382, %v382
  %v384 = vsub.f32 %v383, 1.0
  %v385 = vadd.f32 %v383, 1.0
  %v386 = vrcp.pop %v385
  %v387 = vmul.f32 %v385, %v386
  %v388 = vsub.f32 1.0, %v387
  %v389 = vmul.f32 %v386, %v388
  %v390 = vadd.f32 %v386, %v389
  %vm391 = vweird.f32 %v385
  %vm392 = vweird.f32 %v386
  %vm393 = vmor %vm391, %vm392
  %v394 = vsel %vm393, %v386, %v390
  %v395 = vand.u32 2147483647, %v385
  %vm396 = vcmp.eq.f32.partialorder %v395, 8.507059e+37
  %v397 = vand.u32 %v385, 2147483648
  %v398 = vor.u32 1.1754944e-38, %v397
  %v399 = vsel %vm396, %v398, %v394
  %v400 = vmul.f32 %v384, %v399
  %v401 = vmul.f32 %v377, %v400
  %v402 = vld [vmem:[%s3 + $0x80] sm:$0xff]
  %v403 = vld [vmem:[%s3 + $0x88] sm:$0xff]
  %v404 = vld [vmem:[%s3 + $0x90] sm:$0xff]
  %v405 = vld [vmem:[%s3 + $0x98] sm:$0xff]
  %v406 = vld [vmem:[%s3 + $0xa0] sm:$0x1]
  %v407 = vperm.slane %v406, 0
  %v409 = vsel %vm299, %v401, 0
  %411 = vmatpush.msra.mxu0 0.0
  %412 = vmatpush.msra.mxu0 0.0
  %413 = vmatpush.msra.mxu0 0.0
  %414 = vmatpush.msra.mxu0 0.0
  %415 = vmatpush.msra.mxu0 0.0
  %416 = vmatpush.msra.mxu0 0.0
  %417 = vmatpush.msra.mxu0 0.0
  %418 = vmatpush.msra.mxu0 0.0
  %419 = vmatpush.msra.mxu0 0.0
  %420 = vmatpush.msra.mxu0 0.0
  %421 = vmatpush.msra.mxu0 0.0
  %422 = vmatpush.msra.mxu0 0.0
  %423 = vmatpush.msra.mxu0 %v405
  %424 = vmatpush.msra.mxu0 %v404
  %425 = vmatpush.msra.mxu0 %v403
  %426 = vmatpush.msra.mxu0 %v402
  %427 = vmatmul.f32.gmra.mxu0 %v409
  %v428 = vpop.f32.mrf.mxu0
  %v429 = vadd.f32 %v407, %v428
  %430 = vdwg.mxu0
  %v431 = vmin.f32 %v429, 20.0
  %v432 = vmul.f32 %v431, 1.442695
  %v433 = vpow.pop %v432
  %v434 = vadd.f32 %v433, 1.0
  %v435 = vmul.f32 %v434, %v434
  %v436 = vsub.f32 %v435, 1.0
  %v437 = vadd.f32 %v435, 1.0
  %v438 = vrcp.pop %v437
  %v439 = vmul.f32 %v437, %v438
  %v440 = vsub.f32 1.0, %v439
  %v441 = vmul.f32 %v438, %v440
  %v442 = vadd.f32 %v438, %v441
  %vm443 = vweird.f32 %v437
  %vm444 = vweird.f32 %v438
  %vm445 = vmor %vm443, %vm444
  %v446 = vsel %vm445, %v438, %v442
  %v447 = vand.u32 2147483647, %v437
  %vm448 = vcmp.eq.f32.partialorder %v447, 8.507059e+37
  %v449 = vand.u32 %v437, 2147483648
  %v450 = vor.u32 1.1754944e-38, %v449
  %v451 = vsel %vm448, %v450, %v446
  %v452 = vmul.f32 %v436, %v451
  %v453 = vmul.f32 %v429, %v452
  %v454 = vld [vmem:[%s3 + $0xa8] sm:$0xff]
  %v455 = vld [vmem:[%s3 + $0xb0] sm:$0xff]
  %v456 = vld [vmem:[%s3 + $0xb8] sm:$0xff]
  %v457 = vld [vmem:[%s3 + $0xc0] sm:$0xff]
  %v458 = vld [vmem:[%s3 + $0xc8] sm:$0x1]
  %v459 = vperm.slane %v458, 0
  %v461 = vsel %vm299, %v453, 0
  %463 = vmatpush.msra.mxu0 0.0
  %464 = vmatpush.msra.mxu0 0.0
  %465 = vmatpush.msra.mxu0 0.0
  %466 = vmatpush.msra.mxu0 0.0
  %467 = vmatpush.msra.mxu0 0.0
  %468 = vmatpush.msra.mxu0 0.0
  %469 = vmatpush.msra.mxu0 0.0
  %470 = vmatpush.msra.mxu0 0.0
  %471 = vmatpush.msra.mxu0 0.0
  %472 = vmatpush.msra.mxu0 0.0
  %473 = vmatpush.msra.mxu0 0.0
  %474 = vmatpush.msra.mxu0 0.0
  %475 = vmatpush.msra.mxu0 %v457
  %476 = vmatpush.msra.mxu0 %v456
  %477 = vmatpush.msra.mxu0 %v455
  %478 = vmatpush.msra.mxu0 %v454
  %479 = vmatmul.f32.gmra.mxu0 %v461
  %v480 = vpop.f32.mrf.mxu0
  %v481 = vadd.f32 %v459, %v480
  %482 = vdwg.mxu0
  %483 = vst.msk [vmem:[%s4] sm:$0xff] %vm268, %v481
  // Predicated region
  $region18: #{mlp_forward.1} parent=0 // pred_check
    _
  $region19: #{mlp_forward.1} parent=0 // pred_check_branch
    %485 = sbr.rel (0) target = $region21
  $region20: #{mlp_forward.1} parent=0 // pred_region
    _
  $region21: #{mlp_forward.1} parent=0 // pred_fallthru
    _
  // Predicated region
  $region22: #{mlp_forward.1} parent=0 // pred_check
    _
  $region23: #{mlp_forward.1} parent=0 // pred_check_branch
    %487 = sbr.rel (0) target = $region25
  $region24: #{mlp_forward.1} parent=0 // pred_region
    _
  $region25: #{mlp_forward.1} parent=0 // pred_fallthru
    _

</llo_original>
